<compile_context>
chip_gen: v7x
topology: tpu7x:2x2x1
jax: 0.10.0
libtpu: 0.0.40
codegen_flags: <defaults>
</compile_context>

<pallas_src>
import functools

import jax
import jax.numpy as jnp
from jax.experimental import pallas as pl
from jax.experimental.pallas import tpu as pltpu


# ---------------------------------------------------------------------------
# helpers
# ---------------------------------------------------------------------------
_LANE = 128
_VMEM_LIMIT = 32 * 1024 * 1024  # safe on v5e/v6e (128 MiB) and v7x (64 MiB)


def _round_up(x, m):
    return -(-x // m) * m


def _is_two_tensorcore_chip():
    # v7x has 2 TensorCores per chip; v4/v5e/v6e have 1.
    try:
        return "7" in jax.devices()[0].device_kind
    except Exception:  # pragma: no cover - defensive
        return False


# ---------------------------------------------------------------------------
# Kernel 1: DebiasCLIP.forward() contrastive-logits tail
#   image_features, text_features -> normalize -> exp(logit_scale) * I @ T^T
# ---------------------------------------------------------------------------
def _clip_logits_kernel(img_ref, txt_ref, scale_ref, li_ref):
    scale = scale_ref[0, 0]                       # exp(logit_scale), SMEM scalar
    img = img_ref[...]                            # (tbi, D) f32
    txt = txt_ref[...]                            # (tbt, D) f32
    # Fold the logit scale into the image-normalization factor (Bi*D multiply
    # instead of a Bi*Bt output multiply); bf16 MXU operands, f32 accumulation.
    img_n = (img * (jax.lax.rsqrt(jnp.sum(img * img, axis=-1, keepdims=True))
                    * scale)).astype(jnp.bfloat16)
    txt_n = (txt * jax.lax.rsqrt(jnp.sum(txt * txt, axis=-1, keepdims=True))
             ).astype(jnp.bfloat16)
    li_ref[...] = jax.lax.dot_general(img_n, txt_n, (((1,), (1,)), ((), ())),
                                      preferred_element_type=jnp.float32)


@jax.jit
def clip_contrastive_logits(image_features, text_features, logit_scale):
    """DebiasCLIP.forward() after the encoders: normalized, scaled logits."""
    Bi, D = image_features.shape
    Bt, _ = text_features.shape
    # TODO(synk): CLIP training clamps logit_scale to ln(100) outside forward();
    # forward() itself applies exp() unclamped, which we mirror here.
    scale = jnp.exp(jnp.asarray(logit_scale, jnp.float32)).reshape(1, 1)

    # 2-D "parallel" output grid: 512-capped tiles bound VMEM and feed both v7x
    # TensorCores; small batches collapse to a single grid point. Ragged edges
    # are handled by Pallas (masked output writeback).
    tbi = Bi if Bi <= 512 else 512
    tbt = Bt if Bt <= 512 else 512
    grid = (pl.cdiv(Bi, tbi), pl.cdiv(Bt, tbt))

    lpi = pl.pallas_call(
        _clip_logits_kernel,
        out_shape=jax.ShapeDtypeStruct((Bi, Bt), jnp.float32),
        grid_spec=pltpu.PrefetchScalarGridSpec(
            num_scalar_prefetch=0,
            grid=grid,
            in_specs=[
                pl.BlockSpec((tbi, D), lambda i, j: (i, 0)),
                pl.BlockSpec((tbt, D), lambda i, j: (j, 0)),
                pl.BlockSpec(memory_space=pltpu.MemorySpace.SMEM),  # scalar
            ],
            out_specs=pl.BlockSpec((tbi, tbt), lambda i, j: (i, j)),
        ),
        compiler_params=pltpu.CompilerParams(
            dimension_semantics=("parallel", "parallel"),
            vmem_limit_bytes=_VMEM_LIMIT,
        ),
    )(image_features, text_features, scale)
    # logits_per_text is exactly logits_per_image.t() in the PyTorch model.
    return lpi, lpi.T


def clip_logits_reference(image_features, text_features, logit_scale):
    imf = image_features / jnp.linalg.norm(image_features, axis=-1, keepdims=True)
    txf = text_features / jnp.linalg.norm(text_features, axis=-1, keepdims=True)
    scale = jnp.exp(jnp.asarray(logit_scale, jnp.float32))
    lpi = scale * jnp.matmul(imf, txf.T, precision=jax.lax.Precision.HIGHEST)
    return lpi, lpi.T


# ---------------------------------------------------------------------------
# Kernel 2: adversary MLP head (Linear->ReLU x3 -> Linear -> sigmoid), fused.
# ---------------------------------------------------------------------------
def _adversary_kernel(x_ref, w1_ref, w2_ref, w3_ref, w4_ref, b_ref, o_ref):
    b = b_ref[...]                                     # (8, 128) f32, rows 4..7 zero
    x = x_ref[...].astype(jnp.bfloat16)                # in-kernel cast (free on VPU)
    h = jnp.dot(x, w1_ref[...], preferred_element_type=jnp.float32) + b[0:1, :]
    h = jnp.maximum(h, 0.0).astype(jnp.bfloat16)
    h = jnp.dot(h, w2_ref[...], preferred_element_type=jnp.float32) + b[1:2, :]
    h = jnp.maximum(h, 0.0).astype(jnp.bfloat16)
    h = jnp.dot(h, w3_ref[...], preferred_element_type=jnp.float32) + b[2:3, :]
    h = jnp.maximum(h, 0.0).astype(jnp.bfloat16)
    z = jnp.dot(h, w4_ref[...], preferred_element_type=jnp.float32) + b[3:4, :]
    o_ref[...] = jax.nn.sigmoid(z).astype(o_ref.dtype)  # lane-dense bf16 store


def init_adversary_params(key, n_input, n_output=1, hidden_size=32):
    """nn.Linear-style init; weights stored as [in, out] (PyTorch W.T)."""
    dims = [(n_input, hidden_size), (hidden_size, hidden_size),
            (hidden_size, hidden_size), (hidden_size, n_output)]
    params = []
    for fan_in, fan_out in dims:
        key, kw, kb = jax.random.split(key, 3)
        bound = 1.0 / jnp.sqrt(float(fan_in))
        w = jax.random.uniform(kw, (fan_in, fan_out), jnp.float32, -bound, bound)
        b = jax.random.uniform(kb, (fan_out,), jnp.float32, -bound, bound)
        params.extend([w, b])
    return tuple(params)


def prepare_adversary_params(w1, b1, w2, b2, w3, b3, w4, b4):
    """Zero-pad hidden/output dims to 128 lanes (mathematically identical:
    ReLU(0)=0 and zero weight rows/cols contribute nothing), cast weights to
    bf16, stack biases into a single (8, 128) f32 operand."""
    d_in, hidden = w1.shape
    n_out = w4.shape[1]
    assert hidden <= _LANE and n_out <= _LANE
    Dp = max(_LANE, _round_up(d_in, _LANE))
    H = _LANE

    def pad_w(w, rows, cols):
        return jnp.pad(w, ((0, rows - w.shape[0]), (0, cols - w.shape[1])))

    def pad_b(b):
        return jnp.pad(b, (0, _LANE - b.shape[0]))

    w1p = pad_w(w1, Dp, H).astype(jnp.bfloat16)
    w2p = pad_w(w2, H, H).astype(jnp.bfloat16)
    w3p = pad_w(w3, H, H).astype(jnp.bfloat16)
    w4p = pad_w(w4, H, _LANE).astype(jnp.bfloat16)
    bstack = jnp.stack([pad_b(b1), pad_b(b2), pad_b(b3), pad_b(b4)])
    bstack = jnp.pad(bstack, ((0, 4), (0, 0))).astype(jnp.float32)  # (8, 128)
    return (w1p, w2p, w3p, w4p, bstack)


def _default_block_b(B):
    if _is_two_tensorcore_chip():
        # v7x: keep >=2 "parallel" grid points for mid/large batches so both
        # TensorCores get work; 512-row tiles stay well inside 64 MiB VMEM.
        if B <= 256:
            return _round_up(B, 8)
        return min(512, _round_up(-(-B // 2), 8))
    # v5e / v6e: single TensorCore, 128 MiB VMEM -> biggest tile (fewer grid
    # steps => less fixed per-step overhead on a DMA-bound kernel).
    return min(2048, _round_up(B, 8))


@functools.partial(jax.jit, static_argnames=("block_b", "n_output"))
def adversary_forward(x, padded_params, *, block_b=None, n_output=1):
    w1p, w2p, w3p, w4p, bstack = padded_params
    B, D = x.shape
    Dp = w1p.shape[0]
    Op = w4p.shape[1]

    if D < Dp:
        # only when the feature dim is not already lane-aligned (512/640/768 are)
        x = jnp.pad(x, ((0, 0), (0, Dp - D)))

    if block_b is None:
        block_b = _default_block_b(B)
    block_b = _round_up(min(block_b, _round_up(B, 8)), 8)
    grid_b = pl.cdiv(B, block_b)     # ragged edge block handled by Pallas
    const2 = lambda i: (0, 0)

    out = pl.pallas_call(
        _adversary_kernel,
        out_shape=jax.ShapeDtypeStruct((B, Op), jnp.bfloat16),  # halve writeback
        grid_spec=pltpu.PrefetchScalarGridSpec(
            num_scalar_prefetch=0,
            grid=(grid_b,),
            in_specs=[
                pl.BlockSpec((block_b, Dp), lambda i: (i, 0)),
                pl.BlockSpec(w1p.shape, const2),
                pl.BlockSpec(w2p.shape, const2),
                pl.BlockSpec(w3p.shape, const2),
                pl.BlockSpec(w4p.shape, const2),
                pl.BlockSpec(bstack.shape, const2),
            ],
            out_specs=pl.BlockSpec((block_b, Op), lambda i: (i, 0)),
        ),
        compiler_params=pltpu.CompilerParams(
            dimension_semantics=("parallel",),
            vmem_limit_bytes=_VMEM_LIMIT,
        ),
    )(x, w1p, w2p, w3p, w4p, bstack)
    return out[:, :n_output].astype(jnp.float32)


def adversary_reference(x, w1, b1, w2, b2, w3, b3, w4, b4):
    mm = lambda a, b: jnp.matmul(a, b, precision=jax.lax.Precision.HIGHEST)
    h = jnp.maximum(mm(x, w1) + b1, 0.0)
    h = jnp.maximum(mm(h, w2) + b2, 0.0)
    h = jnp.maximum(mm(h, w3) + b3, 0.0)
    return jax.nn.sigmoid(mm(h, w4) + b4)


# ---------------------------------------------------------------------------
if __name__ == "__main__":
    key = jax.random.PRNGKey(0)
    EMBED = 512  # hidden_dim default in DebiasCLIP.__init__

    # ---- DebiasCLIP.forward tail: contrastive logits ----------------------
    # TODO(synk): the full CLIP image/text encoders (ViT/ResNet, transformer
    # resblocks, token/positional embeddings, debias-token insertion, ln_final,
    # text_projection) are pretrained networks not re-implemented here; this
    # kernel consumes their output embeddings exactly as forward() does.
    key, ki, kt = jax.random.split(key, 3)
    B_IMG, B_TXT = 128, 128
    image_features = jax.random.normal(ki, (B_IMG, EMBED), jnp.float32)
    text_features = jax.random.normal(kt, (B_TXT, EMBED), jnp.float32)
    logit_scale = jnp.asarray(jnp.log(1.0 / 0.07), jnp.float32)  # CLIP init

    lpi, lpt = clip_contrastive_logits(image_features, text_features, logit_scale)
    lpi, lpt = jax.block_until_ready((lpi, lpt))
    ref_lpi, ref_lpt = clip_logits_reference(image_features, text_features,
                                             logit_scale)
    assert lpi.shape == (B_IMG, B_TXT) and lpt.shape == (B_TXT, B_IMG)
    assert jnp.allclose(lpi, ref_lpi, atol=5e-2, rtol=1e-2), "logits_per_image mismatch"
    assert jnp.allclose(lpt, ref_lpt, atol=5e-2, rtol=1e-2), "logits_per_text mismatch"
    assert jnp.array_equal(lpt, lpi.T), "logits_per_text must be exact transpose"

    # ---- adversary MLP head ------------------------------------------------
    key, kp, kx = jax.random.split(key, 3)
    raw = init_adversary_params(kp, EMBED, n_output=1, hidden_size=32)
    padded = prepare_adversary_params(*raw)

    # small batch: default block_b (single step on v5e/v6e, <=2 steps on v7x)
    x_small = jax.random.normal(kx, (256, EMBED), jnp.float32)
    out_small = jax.block_until_ready(adversary_forward(x_small, padded))
    ref_small = adversary_reference(x_small, *raw)
    assert out_small.shape == (256, 1)
    assert jnp.allclose(out_small, ref_small, atol=2e-2), "adversary (small) mismatch"

    # larger / ragged batch: 512-row tiles, ragged edge block handled by Pallas
    key, kx2 = jax.random.split(key)
    x_big = jax.random.normal(kx2, (1000, EMBED), jnp.float32)
    out_big = jax.block_until_ready(adversary_forward(x_big, padded, block_b=512))
    ref_big = adversary_reference(x_big, *raw)
    assert out_big.shape == (1000, 1)
    assert jnp.allclose(out_big, ref_big, atol=2e-2), "adversary (big) mismatch"

    print("KERNEL_OK")
</pallas_src>

<mosaic_0001>
module attributes {stable_mosaic.version = 11 : i64} {
  func.func @_clip_logits_kernel(%arg0: i32, %arg1: i32, %arg2: memref<128x512xf32, #tpu.memory_space<vmem>>, %arg3: memref<128x512xf32, #tpu.memory_space<vmem>>, %arg4: memref<1x1xf32, #tpu.memory_space<smem>>, %arg5: memref<128x128xf32, #tpu.memory_space<vmem>>) attributes {dimension_semantics = [#tpu.dimension_semantics<parallel>, #tpu.dimension_semantics<parallel>], iteration_bounds = array<i64: 1, 1>, scalar_prefetch = 0 : i64, scratch_operands = 0 : i64, tpu.core_type = #tpu.core_type<tc>, window_params = [{transform_indices = @transform_0, window_bounds = array<i64: 128, 512>}, {transform_indices = @transform_1, window_bounds = array<i64: 128, 512>}, {transform_indices = @transform_2, window_bounds = array<i64: 1, 1>}, {transform_indices = @transform_3, window_bounds = array<i64: 128, 128>}]} {
    %c0 = arith.constant 0 : index
    %c0_0 = arith.constant 0 : index
    %0 = memref.load %arg4[%c0, %c0_0] : memref<1x1xf32, #tpu.memory_space<smem>>
    %c0_1 = arith.constant 0 : index
    %c0_2 = arith.constant 0 : index
    %1 = vector.load %arg2[%c0_1, %c0_2] : memref<128x512xf32, #tpu.memory_space<vmem>>, vector<128x512xf32>
    %c0_3 = arith.constant 0 : index
    %c0_4 = arith.constant 0 : index
    %2 = vector.load %arg3[%c0_3, %c0_4] : memref<128x512xf32, #tpu.memory_space<vmem>>, vector<128x512xf32>
    %3 = arith.mulf %1, %1 : vector<128x512xf32>
    %cst = arith.constant dense<0.000000e+00> : vector<128xf32>
    %4 = vector.multi_reduction <add>, %3, %cst [1] : vector<128x512xf32> to vector<128xf32>
    %5 = vector.shape_cast %4 : vector<128xf32> to vector<128x1xf32>
    %6 = math.rsqrt %5 : vector<128x1xf32>
    %7 = vector.broadcast %0 : f32 to vector<128x1xf32>
    %8 = arith.mulf %6, %7 : vector<128x1xf32>
    %9 = vector.broadcast %8 : vector<128x1xf32> to vector<128x512xf32>
    %10 = arith.mulf %1, %9 : vector<128x512xf32>
    %11 = arith.truncf %10 : vector<128x512xf32> to vector<128x512xbf16>
    %12 = arith.mulf %2, %2 : vector<128x512xf32>
    %cst_5 = arith.constant dense<0.000000e+00> : vector<128xf32>
    %13 = vector.multi_reduction <add>, %12, %cst_5 [1] : vector<128x512xf32> to vector<128xf32>
    %14 = vector.shape_cast %13 : vector<128xf32> to vector<128x1xf32>
    %15 = math.rsqrt %14 : vector<128x1xf32>
    %16 = vector.broadcast %15 : vector<128x1xf32> to vector<128x512xf32>
    %17 = arith.mulf %2, %16 : vector<128x512xf32>
    %18 = arith.truncf %17 : vector<128x512xf32> to vector<128x512xbf16>
    %cst_6 = arith.constant dense<0.000000e+00> : vector<128x128xf32>
    %19 = tpu.matmul %11, %18, %cst_6 {dimension_numbers = #tpu.dot_dimension_numbers<[1], [1], [0], [0], [0, 0, 1, 0], [], []>} : vector<128x512xbf16>, vector<128x512xbf16>, vector<128x128xf32> -> vector<128x128xf32>
    %c0_7 = arith.constant 0 : index
    %c0_8 = arith.constant 0 : index
    %20 = vector.load %arg5[%c0_7, %c0_8] : memref<128x128xf32, #tpu.memory_space<vmem>>, vector<128x128xf32>
    tpu.vector_store %arg5[%c0_7, %c0_8], %19 {strides = array<i32>} : memref<128x128xf32, #tpu.memory_space<vmem>>, vector<128x128xf32>,
    return
  }
  func.func @transform_0(%arg0: i32, %arg1: i32) -> (i32, i32) {
    %c0_i32 = arith.constant 0 : i32
    %c0_i32_0 = arith.constant 0 : i32
    return %arg0, %c0_i32 : i32, i32
  }
  func.func @transform_1(%arg0: i32, %arg1: i32) -> (i32, i32) {
    %c0_i32 = arith.constant 0 : i32
    %c0_i32_0 = arith.constant 0 : i32
    return %arg1, %c0_i32 : i32, i32
  }
  func.func @transform_2(%arg0: i32, %arg1: i32) -> (i32, i32) {
    %c0_i32 = arith.constant 0 : i32
    %c0_i32_0 = arith.constant 0 : i32
    %c0_i32_1 = arith.constant 0 : i32
    return %c0_i32, %c0_i32_0 : i32, i32
  }
  func.func @transform_3(%arg0: i32, %arg1: i32) -> (i32, i32) {
    %c0_i32 = arith.constant 0 : i32
    return %arg0, %arg1 : i32, i32
  }
}

</mosaic_0001>

<llo_original>
// kernel: clip_contrastive_logits.1
$region0: #{clip_contrastive_logits.1}
  #allocation0 [shape = 'u32[]', space=smem, size = 0x4, offset = 0x4, fixed_abs, tag = 'smem constant byte address 0x4 - core index']
  #allocation1 [shape = 'u32[144,128]{1,0:T(1,128)}', space=vmem, size = 0x12000, scoped, tag = 'internal scratch']
  #allocation2 [shape = 'f32[1,1]{1,0:T(1,128)S(6)}', space=smem, size = 0x200, scoped, tag = 'scoped memory for clip_contrastive_logits.1']
  %s0 = inlined_call_operand.hbm [shape: f32[128,512], index: 0, kind: input, shape index: {}]
  %s1 = inlined_call_operand.hbm [shape: f32[128,512], index: 1, kind: input, shape index: {}]
  %s2 = inlined_call_operand.<no memory space> [shape: f32[1,1], index: 2, kind: input, shape index: {}]
  %s3 = inlined_call_operand.vmem [shape: f32[128,128], index: 3, kind: output, shape index: {}]
  %s4 = sld [smem:[#allocation0]]
  $region30: #{clip_contrastive_logits.1} parent=0
    _
  %s6 = ssub.s32 1, %s4
  %s7 = scalar_select 0, %s6, %s4
  %8 = sst [smem:[#allocation2]] %s2
  $region1: #{clip_contrastive_logits.1} parent=0
    #allocation3 [shape = 'u8[262144]{0}', space=vmem, size = 0x40000, scoped, tag = 'input window, operand 0, single buffered']
    #allocation4 [shape = 's32[1]{0}', space=sflag, size = 0x4, scoped, tag = 'scoped memory for clip_contrastive_logits.1']
    #allocation5 [shape = 'u8[262144]{0}', space=vmem, size = 0x40000, scoped, tag = 'input window, operand 1, single buffered']
    #allocation6 [shape = 's32[1]{0}', space=sflag, size = 0x4, scoped, tag = 'scoped memory for clip_contrastive_logits.1']
    %9 = vsyncpa [#allocation4], 0
    %10 = vsyncpa [#allocation6], 0
    // Predicated region
    $region2: #{clip_contrastive_logits.1} parent=1 // pred_check
      _
    $region3: #{clip_contrastive_logits.1} parent=1 // pred_check_branch
      %12 = sbr.rel (0) target = $region5
    $region4: #{clip_contrastive_logits.1} parent=1 // pred_region
      %s14 = ssub.s32 8192, 8192
      %15 = vsyncadd [#allocation4], %s14
      %s16 = sshll.u32 [#allocation3], 4
      %s17 = int_to_ptr.vmem [resolvable:$true] %s16
      %22 = dma.hbm_to_vmem [thread:$0]  %s0, 8192, %s17, [#allocation4], 512, 512, 32
    $region5: #{clip_contrastive_logits.1} parent=1 // pred_fallthru
      _
    // Predicated region
    $region6: #{clip_contrastive_logits.1} parent=1 // pred_check
      _
    $region7: #{clip_contrastive_logits.1} parent=1 // pred_check_branch
      %24 = sbr.rel (0) target = $region9
    $region8: #{clip_contrastive_logits.1} parent=1 // pred_region
      %s26 = ssub.s32 8192, 8192
      %27 = vsyncadd [#allocation6], %s26
      %s28 = sshll.u32 [#allocation5], 4
      %s29 = int_to_ptr.vmem [resolvable:$true] %s28
      %34 = dma.hbm_to_vmem [thread:$0]  %s1, 8192, %s29, [#allocation6], 512, 512, 32
    $region9: #{clip_contrastive_logits.1} parent=1 // pred_fallthru
      _
    // Predicated region
    $region10: #{clip_contrastive_logits.1} parent=1 // pred_check
      _
    $region11: #{clip_contrastive_logits.1} parent=1 // pred_check_branch
      %36 = sbr.rel (0) target = $region13
    $region12: #{clip_contrastive_logits.1} parent=1 // pred_region
      _
    $region13: #{clip_contrastive_logits.1} parent=1 // pred_fallthru
      _
    // Predicated region
    $region14: #{clip_contrastive_logits.1} parent=1 // pred_check
      _
    $region15: #{clip_contrastive_logits.1} parent=1 // pred_check_branch
      %38 = sbr.rel (0) target = $region17
    $region16: #{clip_contrastive_logits.1} parent=1 // pred_region
      %39 = dma.done [#allocation4], 8192
    $region17: #{clip_contrastive_logits.1} parent=1 // pred_fallthru
      _
    // Predicated region
    $region18: #{clip_contrastive_logits.1} parent=1 // pred_check
      _
    $region19: #{clip_contrastive_logits.1} parent=1 // pred_check_branch
      %41 = sbr.rel (0) target = $region21
    $region20: #{clip_contrastive_logits.1} parent=1 // pred_region
      %42 = dma.done [#allocation6], 8192
    $region21: #{clip_contrastive_logits.1} parent=1 // pred_fallthru
      _
    %s44 = sld [smem:[#allocation2]]
    %v45 = vld [vmem:[#allocation3] sm:$0xff]
    %v46 = vld [vmem:[#allocation3 + $0x8] sm:$0xff]
    %v47 = vld [vmem:[#allocation3 + $0x10] sm:$0xff]
    %v48 = vld [vmem:[#allocation3 + $0x18] sm:$0xff]
    %v49 = vld [vmem:[#allocation3 + $0x20] sm:$0xff]
    %v50 = vld [vmem:[#allocation3 + $0x28] sm:$0xff]
    %v51 = vld [vmem:[#allocation3 + $0x30] sm:$0xff]
    %v52 = vld [vmem:[#allocation3 + $0x38] sm:$0xff]
    %v53 = vld [vmem:[#allocation3 + $0x40] sm:$0xff]
    %v54 = vld [vmem:[#allocation3 + $0x48] sm:$0xff]
    %v55 = vld [vmem:[#allocation3 + $0x50] sm:$0xff]
    %v56 = vld [vmem:[#allocation3 + $0x58] sm:$0xff]
    %v57 = vld [vmem:[#allocation3 + $0x60] sm:$0xff]
    %v58 = vld [vmem:[#allocation3 + $0x68] sm:$0xff]
    %v59 = vld [vmem:[#allocation3 + $0x70] sm:$0xff]
    %v60 = vld [vmem:[#allocation3 + $0x78] sm:$0xff]
    %v61 = vld [vmem:[#allocation3 + $0x80] sm:$0xff]
    %v62 = vld [vmem:[#allocation3 + $0x88] sm:$0xff]
    %v63 = vld [vmem:[#allocation3 + $0x90] sm:$0xff]
    %v64 = vld [vmem:[#allocation3 + $0x98] sm:$0xff]
    %v65 = vld [vmem:[#allocation3 + $0xa0] sm:$0xff]
    %v66 = vld [vmem:[#allocation3 + $0xa8] sm:$0xff]
    %v67 = vld [vmem:[#allocation3 + $0xb0] sm:$0xff]
    %v68 = vld [vmem:[#allocation3 + $0xb8] sm:$0xff]
    %v69 = vld [vmem:[#allocation3 + $0xc0] sm:$0xff]
    %v70 = vld [vmem:[#allocation3 + $0xc8] sm:$0xff]
    %v71 = vld [vmem:[#allocation3 + $0xd0] sm:$0xff]
    %v72 = vld [vmem:[#allocation3 + $0xd8] sm:$0xff]
    %v73 = vld [vmem:[#allocation3 + $0xe0] sm:$0xff]
    %v74 = vld [vmem:[#allocation3 + $0xe8] sm:$0xff]
    %v75 = vld [vmem:[#allocation3 + $0xf0] sm:$0xff]
    %v76 = vld [vmem:[#allocation3 + $0xf8] sm:$0xff]
    %v77 = vld [vmem:[#allocation3 + $0x100] sm:$0xff]
    %v78 = vld [vmem:[#allocation3 + $0x108] sm:$0xff]
    %v79 = vld [vmem:[#allocation3 + $0x110] sm:$0xff]
    %v80 = vld [vmem:[#allocation3 + $0x118] sm:$0xff]
    %v81 = vld [vmem:[#allocation3 + $0x120] sm:$0xff]
    %v82 = vld [vmem:[#allocation3 + $0x128] sm:$0xff]
    %v83 = vld [vmem:[#allocation3 + $0x130] sm:$0xff]
    %v84 = vld [vmem:[#allocation3 + $0x138] sm:$0xff]
    %v85 = vld [vmem:[#allocation3 + $0x140] sm:$0xff]
    %v86 = vld [vmem:[#allocation3 + $0x148] sm:$0xff]
    %v87 = vld [vmem:[#allocation3 + $0x150] sm:$0xff]
    %v88 = vld [vmem:[#allocation3 + $0x158] sm:$0xff]
    %v89 = vld [vmem:[#allocation3 + $0x160] sm:$0xff]
    %v90 = vld [vmem:[#allocation3 + $0x168] sm:$0xff]
    %v91 = vld [vmem:[#allocation3 + $0x170] sm:$0xff]
    %v92 = vld [vmem:[#allocation3 + $0x178] sm:$0xff]
    %v93 = vld [vmem:[#allocation3 + $0x180] sm:$0xff]
    %v94 = vld [vmem:[#allocation3 + $0x188] sm:$0xff]
    %v95 = vld [vmem:[#allocation3 + $0x190] sm:$0xff]
    %v96 = vld [vmem:[#allocation3 + $0x198] sm:$0xff]
    %v97 = vld [vmem:[#allocation3 + $0x1a0] sm:$0xff]
    %v98 = vld [vmem:[#allocation3 + $0x1a8] sm:$0xff]
    %v99 = vld [vmem:[#allocation3 + $0x1b0] sm:$0xff]
    %v100 = vld [vmem:[#allocation3 + $0x1b8] sm:$0xff]
    %v101 = vld [vmem:[#allocation3 + $0x1c0] sm:$0xff]
    %v102 = vld [vmem:[#allocation3 + $0x1c8] sm:$0xff]
    %v103 = vld [vmem:[#allocation3 + $0x1d0] sm:$0xff]
    %v104 = vld [vmem:[#allocation3 + $0x1d8] sm:$0xff]
    %v105 = vld [vmem:[#allocation3 + $0x1e0] sm:$0xff]
    %v106 = vld [vmem:[#allocation3 + $0x1e8] sm:$0xff]
    %v107 = vld [vmem:[#allocation3 + $0x1f0] sm:$0xff]
    %v108 = vld [vmem:[#allocation3 + $0x1f8] sm:$0xff]
    %v109 = vld [vmem:[#allocation5] sm:$0xff]
    %v110 = vld [vmem:[#allocation5 + $0x8] sm:$0xff]
    %v111 = vld [vmem:[#allocation5 + $0x10] sm:$0xff]
    %v112 = vld [vmem:[#allocation5 + $0x18] sm:$0xff]
    %v113 = vld [vmem:[#allocation5 + $0x20] sm:$0xff]
    %v114 = vld [vmem:[#allocation5 + $0x28] sm:$0xff]
    %v115 = vld [vmem:[#allocation5 + $0x30] sm:$0xff]
    %v116 = vld [vmem:[#allocation5 + $0x38] sm:$0xff]
    %v117 = vld [vmem:[#allocation5 + $0x40] sm:$0xff]
    %v118 = vld [vmem:[#allocation5 + $0x48] sm:$0xff]
    %v119 = vld [vmem:[#allocation5 + $0x50] sm:$0xff]
    %v120 = vld [vmem:[#allocation5 + $0x58] sm:$0xff]
    %v121 = vld [vmem:[#allocation5 + $0x60] sm:$0xff]
    %v122 = vld [vmem:[#allocation5 + $0x68] sm:$0xff]
    %v123 = vld [vmem:[#allocation5 + $0x70] sm:$0xff]
    %v124 = vld [vmem:[#allocation5 + $0x78] sm:$0xff]
    %v125 = vld [vmem:[#allocation5 + $0x80] sm:$0xff]
    %v126 = vld [vmem:[#allocation5 + $0x88] sm:$0xff]
    %v127 = vld [vmem:[#allocation5 + $0x90] sm:$0xff]
    %v128 = vld [vmem:[#allocation5 + $0x98] sm:$0xff]
    %v129 = vld [vmem:[#allocation5 + $0xa0] sm:$0xff]
    %v130 = vld [vmem:[#allocation5 + $0xa8] sm:$0xff]
    %v131 = vld [vmem:[#allocation5 + $0xb0] sm:$0xff]
    %v132 = vld [vmem:[#allocation5 + $0xb8] sm:$0xff]
    %v133 = vld [vmem:[#allocation5 + $0xc0] sm:$0xff]
    %v134 = vld [vmem:[#allocation5 + $0xc8] sm:$0xff]
    %v135 = vld [vmem:[#allocation5 + $0xd0] sm:$0xff]
    %v136 = vld [vmem:[#allocation5 + $0xd8] sm:$0xff]
    %v137 = vld [vmem:[#allocation5 + $0xe0] sm:$0xff]
    %v138 = vld [vmem:[#allocation5 + $0xe8] sm:$0xff]
    %v139 = vld [vmem:[#allocation5 + $0xf0] sm:$0xff]
    %v140 = vld [vmem:[#allocation5 + $0xf8] sm:$0xff]
    %v141 = vld [vmem:[#allocation5 + $0x100] sm:$0xff]
    %v142 = vld [vmem:[#allocation5 + $0x108] sm:$0xff]
    %v143 = vld [vmem:[#allocation5 + $0x110] sm:$0xff]
    %v144 = vld [vmem:[#allocation5 + $0x118] sm:$0xff]
    %v145 = vld [vmem:[#allocation5 + $0x120] sm:$0xff]
    %v146 = vld [vmem:[#allocation5 + $0x128] sm:$0xff]
    %v147 = vld [vmem:[#allocation5 + $0x130] sm:$0xff]
    %v148 = vld [vmem:[#allocation5 + $0x138] sm:$0xff]
    %v149 = vld [vmem:[#allocation5 + $0x140] sm:$0xff]
    %v150 = vld [vmem:[#allocation5 + $0x148] sm:$0xff]
    %v151 = vld [vmem:[#allocation5 + $0x150] sm:$0xff]
    %v152 = vld [vmem:[#allocation5 + $0x158] sm:$0xff]
    %v153 = vld [vmem:[#allocation5 + $0x160] sm:$0xff]
    %v154 = vld [vmem:[#allocation5 + $0x168] sm:$0xff]
    %v155 = vld [vmem:[#allocation5 + $0x170] sm:$0xff]
    %v156 = vld [vmem:[#allocation5 + $0x178] sm:$0xff]
    %v157 = vld [vmem:[#allocation5 + $0x180] sm:$0xff]
    %v158 = vld [vmem:[#allocation5 + $0x188] sm:$0xff]
    %v159 = vld [vmem:[#allocation5 + $0x190] sm:$0xff]
    %v160 = vld [vmem:[#allocation5 + $0x198] sm:$0xff]
    %v161 = vld [vmem:[#allocation5 + $0x1a0] sm:$0xff]
    %v162 = vld [vmem:[#allocation5 + $0x1a8] sm:$0xff]
    %v163 = vld [vmem:[#allocation5 + $0x1b0] sm:$0xff]
    %v164 = vld [vmem:[#allocation5 + $0x1b8] sm:$0xff]
    %v165 = vld [vmem:[#allocation5 + $0x1c0] sm:$0xff]
    %v166 = vld [vmem:[#allocation5 + $0x1c8] sm:$0xff]
    %v167 = vld [vmem:[#allocation5 + $0x1d0] sm:$0xff]
    %v168 = vld [vmem:[#allocation5 + $0x1d8] sm:$0xff]
    %v169 = vld [vmem:[#allocation5 + $0x1e0] sm:$0xff]
    %v170 = vld [vmem:[#allocation5 + $0x1e8] sm:$0xff]
    %v171 = vld [vmem:[#allocation5 + $0x1f0] sm:$0xff]
    %v172 = vld [vmem:[#allocation5 + $0x1f8] sm:$0xff]
    %v173 = vmul.f32 %v45, %v45
    %v174 = vmul.f32 %v46, %v46
    %v175 = vmul.f32 %v47, %v47
    %v176 = vmul.f32 %v48, %v48
    %v177 = vmul.f32 %v49, %v49
    %v178 = vmul.f32 %v50, %v50
    %v179 = vmul.f32 %v51, %v51
    %v180 = vmul.f32 %v52, %v52
    %v181 = vmul.f32 %v53, %v53
    %v182 = vmul.f32 %v54, %v54
    %v183 = vmul.f32 %v55, %v55
    %v184 = vmul.f32 %v56, %v56
    %v185 = vmul.f32 %v57, %v57
    %v186 = vmul.f32 %v58, %v58
    %v187 = vmul.f32 %v59, %v59
    %v188 = vmul.f32 %v60, %v60
    %v189 = vmul.f32 %v61, %v61
    %v190 = vmul.f32 %v62, %v62
    %v191 = vmul.f32 %v63, %v63
    %v192 = vmul.f32 %v64, %v64
    %v193 = vmul.f32 %v65, %v65
    %v194 = vmul.f32 %v66, %v66
    %v195 = vmul.f32 %v67, %v67
    %v196 = vmul.f32 %v68, %v68
    %v197 = vmul.f32 %v69, %v69
    %v198 = vmul.f32 %v70, %v70
    %v199 = vmul.f32 %v71, %v71
    %v200 = vmul.f32 %v72, %v72
    %v201 = vmul.f32 %v73, %v73
    %v202 = vmul.f32 %v74, %v74
    %v203 = vmul.f32 %v75, %v75
    %v204 = vmul.f32 %v76, %v76
    %v205 = vmul.f32 %v77, %v77
    %v206 = vmul.f32 %v78, %v78
    %v207 = vmul.f32 %v79, %v79
    %v208 = vmul.f32 %v80, %v80
    %v209 = vmul.f32 %v81, %v81
    %v210 = vmul.f32 %v82, %v82
    %v211 = vmul.f32 %v83, %v83
    %v212 = vmul.f32 %v84, %v84
    %v213 = vmul.f32 %v85, %v85
    %v214 = vmul.f32 %v86, %v86
    %v215 = vmul.f32 %v87, %v87
    %v216 = vmul.f32 %v88, %v88
    %v217 = vmul.f32 %v89, %v89
    %v218 = vmul.f32 %v90, %v90
    %v219 = vmul.f32 %v91, %v91
    %v220 = vmul.f32 %v92, %v92
    %v221 = vmul.f32 %v93, %v93
    %v222 = vmul.f32 %v94, %v94
    %v223 = vmul.f32 %v95, %v95
    %v224 = vmul.f32 %v96, %v96
    %v225 = vmul.f32 %v97, %v97
    %v226 = vmul.f32 %v98, %v98
    %v227 = vmul.f32 %v99, %v99
    %v228 = vmul.f32 %v100, %v100
    %v229 = vmul.f32 %v101, %v101
    %v230 = vmul.f32 %v102, %v102
    %v231 = vmul.f32 %v103, %v103
    %v232 = vmul.f32 %v104, %v104
    %v233 = vmul.f32 %v105, %v105
    %v234 = vmul.f32 %v106, %v106
    %v235 = vmul.f32 %v107, %v107
    %v236 = vmul.f32 %v108, %v108
    %v237 = vadd.f32 %v173, %v174
    %v238 = vadd.f32 %v237, %v175
    %v239 = vadd.f32 %v238, %v176
    %240 = vadd.xlane.f32.xlu0 %v239
    %v241 = vpop.xlane.xlu0 %240
    %v242 = vadd.f32 %v177, %v178
    %v243 = vadd.f32 %v242, %v179
    %v244 = vadd.f32 %v243, %v180
    %245 = vadd.xlane.f32.xlu0 %v244
    %v246 = vpop.xlane.xlu0 %245
    %v247 = vadd.f32 %v181, %v182
    %v248 = vadd.f32 %v247, %v183
    %v249 = vadd.f32 %v248, %v184
    %250 = vadd.xlane.f32.xlu0 %v249
    %v251 = vpop.xlane.xlu0 %250
    %v252 = vadd.f32 %v185, %v186
    %v253 = vadd.f32 %v252, %v187
    %v254 = vadd.f32 %v253, %v188
    %255 = vadd.xlane.f32.xlu0 %v254
    %v256 = vpop.xlane.xlu0 %255
    %v257 = vadd.f32 %v189, %v190
    %v258 = vadd.f32 %v257, %v191
    %v259 = vadd.f32 %v258, %v192
    %260 = vadd.xlane.f32.xlu0 %v259
    %v261 = vpop.xlane.xlu0 %260
    %v262 = vadd.f32 %v193, %v194
    %v263 = vadd.f32 %v262, %v195
    %v264 = vadd.f32 %v263, %v196
    %265 = vadd.xlane.f32.xlu0 %v264
    %v266 = vpop.xlane.xlu0 %265
    %v267 = vadd.f32 %v197, %v198
    %v268 = vadd.f32 %v267, %v199
    %v269 = vadd.f32 %v268, %v200
    %270 = vadd.xlane.f32.xlu0 %v269
    %v271 = vpop.xlane.xlu0 %270
    %v272 = vadd.f32 %v201, %v202
    %v273 = vadd.f32 %v272, %v203
    %v274 = vadd.f32 %v273, %v204
    %275 = vadd.xlane.f32.xlu0 %v274
    %v276 = vpop.xlane.xlu0 %275
    %v277 = vadd.f32 %v205, %v206
    %v278 = vadd.f32 %v277, %v207
    %v279 = vadd.f32 %v278, %v208
    %280 = vadd.xlane.f32.xlu0 %v279
    %v281 = vpop.xlane.xlu0 %280
    %v282 = vadd.f32 %v209, %v210
    %v283 = vadd.f32 %v282, %v211
    %v284 = vadd.f32 %v283, %v212
    %285 = vadd.xlane.f32.xlu0 %v284
    %v286 = vpop.xlane.xlu0 %285
    %v287 = vadd.f32 %v213, %v214
    %v288 = vadd.f32 %v287, %v215
    %v289 = vadd.f32 %v288, %v216
    %290 = vadd.xlane.f32.xlu0 %v289
    %v291 = vpop.xlane.xlu0 %290
    %v292 = vadd.f32 %v217, %v218
    %v293 = vadd.f32 %v292, %v219
    %v294 = vadd.f32 %v293, %v220
    %295 = vadd.xlane.f32.xlu0 %v294
    %v296 = vpop.xlane.xlu0 %295
    %v297 = vadd.f32 %v221, %v222
    %v298 = vadd.f32 %v297, %v223
    %v299 = vadd.f32 %v298, %v224
    %300 = vadd.xlane.f32.xlu0 %v299
    %v301 = vpop.xlane.xlu0 %300
    %v302 = vadd.f32 %v225, %v226
    %v303 = vadd.f32 %v302, %v227
    %v304 = vadd.f32 %v303, %v228
    %305 = vadd.xlane.f32.xlu0 %v304
    %v306 = vpop.xlane.xlu0 %305
    %v307 = vadd.f32 %v229, %v230
    %v308 = vadd.f32 %v307, %v231
    %v309 = vadd.f32 %v308, %v232
    %310 = vadd.xlane.f32.xlu0 %v309
    %v311 = vpop.xlane.xlu0 %310
    %v312 = vadd.f32 %v233, %v234
    %v313 = vadd.f32 %v312, %v235
    %v314 = vadd.f32 %v313, %v236
    %315 = vadd.xlane.f32.xlu0 %v314
    %v316 = vpop.xlane.xlu0 %315
    %v317 = vrsqrt.pop %v241
    %v318 = vrsqrt.pop %v246
    %v319 = vrsqrt.pop %v251
    %v320 = vrsqrt.pop %v256
    %v321 = vrsqrt.pop %v261
    %v322 = vrsqrt.pop %v266
    %v323 = vrsqrt.pop %v271
    %v324 = vrsqrt.pop %v276
    %v325 = vrsqrt.pop %v281
    %v326 = vrsqrt.pop %v286
    %v327 = vrsqrt.pop %v291
    %v328 = vrsqrt.pop %v296
    %v329 = vrsqrt.pop %v301
    %v330 = vrsqrt.pop %v306
    %v331 = vrsqrt.pop %v311
    %v332 = vrsqrt.pop %v316
    %v333 = vstv %s44
    %v334 = vmul.f32 %v317, %v333
    %v335 = vmul.f32 %v318, %v333
    %v336 = vmul.f32 %v319, %v333
    %v337 = vmul.f32 %v320, %v333
    %v338 = vmul.f32 %v321, %v333
    %v339 = vmul.f32 %v322, %v333
    %v340 = vmul.f32 %v323, %v333
    %v341 = vmul.f32 %v324, %v333
    %v342 = vmul.f32 %v325, %v333
    %v343 = vmul.f32 %v326, %v333
    %v344 = vmul.f32 %v327, %v333
    %v345 = vmul.f32 %v328, %v333
    %v346 = vmul.f32 %v329, %v333
    %v347 = vmul.f32 %v330, %v333
    %v348 = vmul.f32 %v331, %v333
    %v349 = vmul.f32 %v332, %v333
    %v350 = vmul.f32 %v45, %v334
    %v351 = vmul.f32 %v46, %v334
    %v352 = vmul.f32 %v47, %v334
    %v353 = vmul.f32 %v48, %v334
    %v354 = vmul.f32 %v49, %v335
    %v355 = vmul.f32 %v50, %v335
    %v356 = vmul.f32 %v51, %v335
    %v357 = vmul.f32 %v52, %v335
    %v358 = vmul.f32 %v53, %v336
    %v359 = vmul.f32 %v54, %v336
    %v360 = vmul.f32 %v55, %v336
    %v361 = vmul.f32 %v56, %v336
    %v362 = vmul.f32 %v57, %v337
    %v363 = vmul.f32 %v58, %v337
    %v364 = vmul.f32 %v59, %v337
    %v365 = vmul.f32 %v60, %v337
    %v366 = vmul.f32 %v61, %v338
    %v367 = vmul.f32 %v62, %v338
    %v368 = vmul.f32 %v63, %v338
    %v369 = vmul.f32 %v64, %v338
    %v370 = vmul.f32 %v65, %v339
    %v371 = vmul.f32 %v66, %v339
    %v372 = vmul.f32 %v67, %v339
    %v373 = vmul.f32 %v68, %v339
    %v374 = vmul.f32 %v69, %v340
    %v375 = vmul.f32 %v70, %v340
    %v376 = vmul.f32 %v71, %v340
    %v377 = vmul.f32 %v72, %v340
    %v378 = vmul.f32 %v73, %v341
    %v379 = vmul.f32 %v74, %v341
    %v380 = vmul.f32 %v75, %v341
    %v381 = vmul.f32 %v76, %v341
    %v382 = vmul.f32 %v77, %v342
    %v383 = vmul.f32 %v78, %v342
    %v384 = vmul.f32 %v79, %v342
    %v385 = vmul.f32 %v80, %v342
    %v386 = vmul.f32 %v81, %v343
    %v387 = vmul.f32 %v82, %v343
    %v388 = vmul.f32 %v83, %v343
    %v389 = vmul.f32 %v84, %v343
    %v390 = vmul.f32 %v85, %v344
    %v391 = vmul.f32 %v86, %v344
    %v392 = vmul.f32 %v87, %v344
    %v393 = vmul.f32 %v88, %v344
    %v394 = vmul.f32 %v89, %v345
    %v395 = vmul.f32 %v90, %v345
    %v396 = vmul.f32 %v91, %v345
    %v397 = vmul.f32 %v92, %v345
    %v398 = vmul.f32 %v93, %v346
    %v399 = vmul.f32 %v94, %v346
    %v400 = vmul.f32 %v95, %v346
    %v401 = vmul.f32 %v96, %v346
    %v402 = vmul.f32 %v97, %v347
    %v403 = vmul.f32 %v98, %v347
    %v404 = vmul.f32 %v99, %v347
    %v405 = vmul.f32 %v100, %v347
    %v406 = vmul.f32 %v101, %v348
    %v407 = vmul.f32 %v102, %v348
    %v408 = vmul.f32 %v103, %v348
    %v409 = vmul.f32 %v104, %v348
    %v410 = vmul.f32 %v105, %v349
    %v411 = vmul.f32 %v106, %v349
    %v412 = vmul.f32 %v107, %v349
    %v413 = vmul.f32 %v108, %v349
    %v414 = vpack.c.bf16 %v354, %v350
    %v415 = vpack.c.bf16 %v355, %v351
    %v416 = vpack.c.bf16 %v356, %v352
    %v417 = vpack.c.bf16 %v357, %v353
    %v418 = vpack.c.bf16 %v362, %v358
    %v419 = vpack.c.bf16 %v363, %v359
    %v420 = vpack.c.bf16 %v364, %v360
    %v421 = vpack.c.bf16 %v365, %v361
    %v422 = vpack.c.bf16 %v370, %v366
    %v423 = vpack.c.bf16 %v371, %v367
    %v424 = vpack.c.bf16 %v372, %v368
    %v425 = vpack.c.bf16 %v373, %v369
    %v426 = vpack.c.bf16 %v378, %v374
    %v427 = vpack.c.bf16 %v379, %v375
    %v428 = vpack.c.bf16 %v380, %v376
    %v429 = vpack.c.bf16 %v381, %v377
    %v430 = vpack.c.bf16 %v386, %v382
    %v431 = vpack.c.bf16 %v387, %v383
    %v432 = vpack.c.bf16 %v388, %v384
    %v433 = vpack.c.bf16 %v389, %v385
    %v434 = vpack.c.bf16 %v394, %v390
    %v435 = vpack.c.bf16 %v395, %v391
    %v436 = vpack.c.bf16 %v396, %v392
    %v437 = vpack.c.bf16 %v397, %v393
    %v438 = vpack.c.bf16 %v402, %v398
    %v439 = vpack.c.bf16 %v403, %v399
    %v440 = vpack.c.bf16 %v404, %v400
    %v441 = vpack.c.bf16 %v405, %v401
    %v442 = vpack.c.bf16 %v410, %v406
    %v443 = vpack.c.bf16 %v411, %v407
    %v444 = vpack.c.bf16 %v412, %v408
    %v445 = vpack.c.bf16 %v413, %v409
    %v446 = vmul.f32 %v109, %v109
    %v447 = vmul.f32 %v110, %v110
    %v448 = vmul.f32 %v111, %v111
    %v449 = vmul.f32 %v112, %v112
    %v450 = vmul.f32 %v113, %v113
    %v451 = vmul.f32 %v114, %v114
    %v452 = vmul.f32 %v115, %v115
    %v453 = vmul.f32 %v116, %v116
    %v454 = vmul.f32 %v117, %v117
    %v455 = vmul.f32 %v118, %v118
    %v456 = vmul.f32 %v119, %v119
    %v457 = vmul.f32 %v120, %v120
    %v458 = vmul.f32 %v121, %v121
    %v459 = vmul.f32 %v122, %v122
    %v460 = vmul.f32 %v123, %v123
    %v461 = vmul.f32 %v124, %v124
    %v462 = vmul.f32 %v125, %v125
    %v463 = vmul.f32 %v126, %v126
    %v464 = vmul.f32 %v127, %v127
    %v465 = vmul.f32 %v128, %v128
    %v466 = vmul.f32 %v129, %v129
    %v467 = vmul.f32 %v130, %v130
    %v468 = vmul.f32 %v131, %v131
    %v469 = vmul.f32 %v132, %v132
    %v470 = vmul.f32 %v133, %v133
    %v471 = vmul.f32 %v134, %v134
    %v472 = vmul.f32 %v135, %v135
    %v473 = vmul.f32 %v136, %v136
    %v474 = vmul.f32 %v137, %v137
    %v475 = vmul.f32 %v138, %v138
    %v476 = vmul.f32 %v139, %v139
    %v477 = vmul.f32 %v140, %v140
    %v478 = vmul.f32 %v141, %v141
    %v479 = vmul.f32 %v142, %v142
    %v480 = vmul.f32 %v143, %v143
    %v481 = vmul.f32 %v144, %v144
    %v482 = vmul.f32 %v145, %v145
    %v483 = vmul.f32 %v146, %v146
    %v484 = vmul.f32 %v147, %v147
    %v485 = vmul.f32 %v148, %v148
    %v486 = vmul.f32 %v149, %v149
    %v487 = vmul.f32 %v150, %v150
    %v488 = vmul.f32 %v151, %v151
    %v489 = vmul.f32 %v152, %v152
    %v490 = vmul.f32 %v153, %v153
    %v491 = vmul.f32 %v154, %v154
    %v492 = vmul.f32 %v155, %v155
    %v493 = vmul.f32 %v156, %v156
    %v494 = vmul.f32 %v157, %v157
    %v495 = vmul.f32 %v158, %v158
    %v496 = vmul.f32 %v159, %v159
    %v497 = vmul.f32 %v160, %v160
    %v498 = vmul.f32 %v161, %v161
    %v499 = vmul.f32 %v162, %v162
    %v500 = vmul.f32 %v163, %v163
    %v501 = vmul.f32 %v164, %v164
    %v502 = vmul.f32 %v165, %v165
    %v503 = vmul.f32 %v166, %v166
    %v504 = vmul.f32 %v167, %v167
    %v505 = vmul.f32 %v168, %v168
    %v506 = vmul.f32 %v169, %v169
    %v507 = vmul.f32 %v170, %v170
    %v508 = vmul.f32 %v171, %v171
    %v509 = vmul.f32 %v172, %v172
    %v510 = vadd.f32 %v446, %v447
    %v511 = vadd.f32 %v510, %v448
    %v512 = vadd.f32 %v511, %v449
    %513 = vadd.xlane.f32.xlu0 %v512
    %v514 = vpop.xlane.xlu0 %513
    %v515 = vadd.f32 %v450, %v451
    %v516 = vadd.f32 %v515, %v452
    %v517 = vadd.f32 %v516, %v453
    %518 = vadd.xlane.f32.xlu0 %v517
    %v519 = vpop.xlane.xlu0 %518
    %v520 = vadd.f32 %v454, %v455
    %v521 = vadd.f32 %v520, %v456
    %v522 = vadd.f32 %v521, %v457
    %523 = vadd.xlane.f32.xlu0 %v522
    %v524 = vpop.xlane.xlu0 %523
    %v525 = vadd.f32 %v458, %v459
    %v526 = vadd.f32 %v525, %v460
    %v527 = vadd.f32 %v526, %v461
    %528 = vadd.xlane.f32.xlu0 %v527
    %v529 = vpop.xlane.xlu0 %528
    %v530 = vadd.f32 %v462, %v463
    %v531 = vadd.f32 %v530, %v464
    %v532 = vadd.f32 %v531, %v465
    %533 = vadd.xlane.f32.xlu0 %v532
    %v534 = vpop.xlane.xlu0 %533
    %v535 = vadd.f32 %v466, %v467
    %v536 = vadd.f32 %v535, %v468
    %v537 = vadd.f32 %v536, %v469
    %538 = vadd.xlane.f32.xlu0 %v537
    %v539 = vpop.xlane.xlu0 %538
    %v540 = vadd.f32 %v470, %v471
    %v541 = vadd.f32 %v540, %v472
    %v542 = vadd.f32 %v541, %v473
    %543 = vadd.xlane.f32.xlu0 %v542
    %v544 = vpop.xlane.xlu0 %543
    %v545 = vadd.f32 %v474, %v475
    %v546 = vadd.f32 %v545, %v476
    %v547 = vadd.f32 %v546, %v477
    %548 = vadd.xlane.f32.xlu0 %v547
    %v549 = vpop.xlane.xlu0 %548
    %v550 = vadd.f32 %v478, %v479
    %v551 = vadd.f32 %v550, %v480
    %v552 = vadd.f32 %v551, %v481
    %553 = vadd.xlane.f32.xlu0 %v552
    %v554 = vpop.xlane.xlu0 %553
    %v555 = vadd.f32 %v482, %v483
    %v556 = vadd.f32 %v555, %v484
    %v557 = vadd.f32 %v556, %v485
    %558 = vadd.xlane.f32.xlu0 %v557
    %v559 = vpop.xlane.xlu0 %558
    %v560 = vadd.f32 %v486, %v487
    %v561 = vadd.f32 %v560, %v488
    %v562 = vadd.f32 %v561, %v489
    %563 = vadd.xlane.f32.xlu0 %v562
    %v564 = vpop.xlane.xlu0 %563
    %v565 = vadd.f32 %v490, %v491
    %v566 = vadd.f32 %v565, %v492
    %v567 = vadd.f32 %v566, %v493
    %568 = vadd.xlane.f32.xlu0 %v567
    %v569 = vpop.xlane.xlu0 %568
    %v570 = vadd.f32 %v494, %v495
    %v571 = vadd.f32 %v570, %v496
    %v572 = vadd.f32 %v571, %v497
    %573 = vadd.xlane.f32.xlu0 %v572
    %v574 = vpop.xlane.xlu0 %573
    %v575 = vadd.f32 %v498, %v499
    %v576 = vadd.f32 %v575, %v500
    %v577 = vadd.f32 %v576, %v501
    %578 = vadd.xlane.f32.xlu0 %v577
    %v579 = vpop.xlane.xlu0 %578
    %v580 = vadd.f32 %v502, %v503
    %v581 = vadd.f32 %v580, %v504
    %v582 = vadd.f32 %v581, %v505
    %583 = vadd.xlane.f32.xlu0 %v582
    %v584 = vpop.xlane.xlu0 %583
    %v585 = vadd.f32 %v506, %v507
    %v586 = vadd.f32 %v585, %v508
    %v587 = vadd.f32 %v586, %v509
    %588 = vadd.xlane.f32.xlu0 %v587
    %v589 = vpop.xlane.xlu0 %588
    %v590 = vrsqrt.pop %v514
    %v591 = vrsqrt.pop %v519
    %v592 = vrsqrt.pop %v524
    %v593 = vrsqrt.pop %v529
    %v594 = vrsqrt.pop %v534
    %v595 = vrsqrt.pop %v539
    %v596 = vrsqrt.pop %v544
    %v597 = vrsqrt.pop %v549
    %v598 = vrsqrt.pop %v554
    %v599 = vrsqrt.pop %v559
    %v600 = vrsqrt.pop %v564
    %v601 = vrsqrt.pop %v569
    %v602 = vrsqrt.pop %v574
    %v603 = vrsqrt.pop %v579
    %v604 = vrsqrt.pop %v584
    %v605 = vrsqrt.pop %v589
    %v606 = vmul.f32 %v109, %v590
    %v607 = vmul.f32 %v110, %v590
    %v608 = vmul.f32 %v111, %v590
    %v609 = vmul.f32 %v112, %v590
    %v610 = vmul.f32 %v113, %v591
    %v611 = vmul.f32 %v114, %v591
    %v612 = vmul.f32 %v115, %v591
    %v613 = vmul.f32 %v116, %v591
    %v614 = vmul.f32 %v117, %v592
    %v615 = vmul.f32 %v118, %v592
    %v616 = vmul.f32 %v119, %v592
    %v617 = vmul.f32 %v120, %v592
    %v618 = vmul.f32 %v121, %v593
    %v619 = vmul.f32 %v122, %v593
    %v620 = vmul.f32 %v123, %v593
    %v621 = vmul.f32 %v124, %v593
    %v622 = vmul.f32 %v125, %v594
    %v623 = vmul.f32 %v126, %v594
    %v624 = vmul.f32 %v127, %v594
    %v625 = vmul.f32 %v128, %v594
    %v626 = vmul.f32 %v129, %v595
    %v627 = vmul.f32 %v130, %v595
    %v628 = vmul.f32 %v131, %v595
    %v629 = vmul.f32 %v132, %v595
    %v630 = vmul.f32 %v133, %v596
    %v631 = vmul.f32 %v134, %v596
    %v632 = vmul.f32 %v135, %v596
    %v633 = vmul.f32 %v136, %v596
    %v634 = vmul.f32 %v137, %v597
    %v635 = vmul.f32 %v138, %v597
    %v636 = vmul.f32 %v139, %v597
    %v637 = vmul.f32 %v140, %v597
    %v638 = vmul.f32 %v141, %v598
    %v639 = vmul.f32 %v142, %v598
    %v640 = vmul.f32 %v143, %v598
    %v641 = vmul.f32 %v144, %v598
    %v642 = vmul.f32 %v145, %v599
    %v643 = vmul.f32 %v146, %v599
    %v644 = vmul.f32 %v147, %v599
    %v645 = vmul.f32 %v148, %v599
    %v646 = vmul.f32 %v149, %v600
    %v647 = vmul.f32 %v150, %v600
    %v648 = vmul.f32 %v151, %v600
    %v649 = vmul.f32 %v152, %v600
    %v650 = vmul.f32 %v153, %v601
    %v651 = vmul.f32 %v154, %v601
    %v652 = vmul.f32 %v155, %v601
    %v653 = vmul.f32 %v156, %v601
    %v654 = vmul.f32 %v157, %v602
    %v655 = vmul.f32 %v158, %v602
    %v656 = vmul.f32 %v159, %v602
    %v657 = vmul.f32 %v160, %v602
    %v658 = vmul.f32 %v161, %v603
    %v659 = vmul.f32 %v162, %v603
    %v660 = vmul.f32 %v163, %v603
    %v661 = vmul.f32 %v164, %v603
    %v662 = vmul.f32 %v165, %v604
    %v663 = vmul.f32 %v166, %v604
    %v664 = vmul.f32 %v167, %v604
    %v665 = vmul.f32 %v168, %v604
    %v666 = vmul.f32 %v169, %v605
    %v667 = vmul.f32 %v170, %v605
    %v668 = vmul.f32 %v171, %v605
    %v669 = vmul.f32 %v172, %v605
    %v670 = vpack.c.bf16 %v610, %v606
    %v671 = vpack.c.bf16 %v611, %v607
    %v672 = vpack.c.bf16 %v612, %v608
    %v673 = vpack.c.bf16 %v613, %v609
    %v674 = vpack.c.bf16 %v618, %v614
    %v675 = vpack.c.bf16 %v619, %v615
    %v676 = vpack.c.bf16 %v620, %v616
    %v677 = vpack.c.bf16 %v621, %v617
    %v678 = vpack.c.bf16 %v626, %v622
    %v679 = vpack.c.bf16 %v627, %v623
    %v680 = vpack.c.bf16 %v628, %v624
    %v681 = vpack.c.bf16 %v629, %v625
    %v682 = vpack.c.bf16 %v634, %v630
    %v683 = vpack.c.bf16 %v635, %v631
    %v684 = vpack.c.bf16 %v636, %v632
    %v685 = vpack.c.bf16 %v637, %v633
    %v686 = vpack.c.bf16 %v642, %v638
    %v687 = vpack.c.bf16 %v643, %v639
    %v688 = vpack.c.bf16 %v644, %v640
    %v689 = vpack.c.bf16 %v645, %v641
    %v690 = vpack.c.bf16 %v650, %v646
    %v691 = vpack.c.bf16 %v651, %v647
    %v692 = vpack.c.bf16 %v652, %v648
    %v693 = vpack.c.bf16 %v653, %v649
    %v694 = vpack.c.bf16 %v658, %v654
    %v695 = vpack.c.bf16 %v659, %v655
    %v696 = vpack.c.bf16 %v660, %v656
    %v697 = vpack.c.bf16 %v661, %v657
    %v698 = vpack.c.bf16 %v666, %v662
    %v699 = vpack.c.bf16 %v667, %v663
    %v700 = vpack.c.bf16 %v668, %v664
    %v701 = vpack.c.bf16 %v669, %v665
    %702 = vmatprep.subr.bf16.mxu0 %v671
    %703 = vmatpush1.bf16.xpose.msra.mxu0 %v670
    %704 = vmatprep.subr.bf16.mxu0 %v675
    %705 = vmatpush1.bf16.xpose.msra.mxu0 %v674
    %706 = vmatprep.subr.bf16.mxu0 %v679
    %707 = vmatpush1.bf16.xpose.msra.mxu0 %v678
    %708 = vmatprep.subr.bf16.mxu0 %v683
    %709 = vmatpush1.bf16.xpose.msra.mxu0 %v682
    %710 = vmatprep.subr.bf16.mxu0 %v687
    %711 = vmatpush1.bf16.xpose.msra.mxu0 %v686
    %712 = vmatprep.subr.bf16.mxu0 %v691
    %713 = vmatpush1.bf16.xpose.msra.mxu0 %v690
    %714 = vmatprep.subr.bf16.mxu0 %v695
    %715 = vmatpush1.bf16.xpose.msra.mxu0 %v694
    %716 = vmatprep.subr.bf16.mxu0 %v699
    %717 = vmatpush1.bf16.xpose.msra.mxu0 %v698
    %718 = vmatprep.subr.bf16.mxu0 0
    %719 = vmatpush1.bf16.xpose.msra.mxu0 0
    %720 = vmatprep.subr.bf16.mxu0 0
    %721 = vmatpush1.bf16.xpose.msra.mxu0 0
    %722 = vmatprep.subr.bf16.mxu0 0
    %723 = vmatpush1.bf16.xpose.msra.mxu0 0
    %724 = vmatprep.subr.bf16.mxu0 0
    %725 = vmatpush1.bf16.xpose.msra.mxu0 0
    %726 = vmatprep.subr.bf16.mxu0 0
    %727 = vmatpush1.bf16.xpose.msra.mxu0 0
    %728 = vmatprep.subr.bf16.mxu0 0
    %729 = vmatpush1.bf16.xpose.msra.mxu0 0
    %730 = vmatprep.subr.bf16.mxu0 0
    %731 = vmatpush1.bf16.xpose.msra.mxu0 0
    %732 = vmatprep.subr.bf16.mxu0 0
    %733 = vmatpush1.bf16.xpose.msra.mxu0 0
    %734 = vmatprep.mubr.bf16.mxu0 %v415
    %735 = vmatmul.mubr.bf16.gmra.mrb[0].mxu0 %v414
    %v736 = vpop.f32.mrb[0].mxu0
    %v737 = vadd.f32 0.0, %v736
    %v738 = vpop.f32.mrb[0].mxu0
    %v739 = vpop.f32.mrb[0].mxu0
    %v740 = vadd.f32 0.0, %v739
    %v741 = vpop.f32.mrb[0].mxu0
    %742 = vmatprep.mubr.bf16.mxu0 %v419
    %743 = vmatmul.mubr.bf16.gmra.mrb[0].mxu0 %v418
    %v744 = vpop.f32.mrb[0].mxu0
    %v745 = vadd.f32 0.0, %v744
    %v746 = vpop.f32.mrb[0].mxu0
    %v747 = vpop.f32.mrb[0].mxu0
    %v748 = vadd.f32 0.0, %v747
    %v749 = vpop.f32.mrb[0].mxu0
    %750 = vmatprep.mubr.bf16.mxu0 %v423
    %751 = vmatmul.mubr.bf16.gmra.mrb[0].mxu0 %v422
    %v752 = vpop.f32.mrb[0].mxu0
    %v753 = vadd.f32 0.0, %v752
    %v754 = vpop.f32.mrb[0].mxu0
    %v755 = vpop.f32.mrb[0].mxu0
    %v756 = vadd.f32 0.0, %v755
    %v757 = vpop.f32.mrb[0].mxu0
    %758 = vmatprep.mubr.bf16.mxu0 %v427
    %759 = vmatmul.mubr.bf16.gmra.mrb[0].mxu0 %v426
    %v760 = vpop.f32.mrb[0].mxu0
    %v761 = vadd.f32 0.0, %v760
    %v762 = vpop.f32.mrb[0].mxu0
    %v763 = vpop.f32.mrb[0].mxu0
    %v764 = vadd.f32 0.0, %v763
    %v765 = vpop.f32.mrb[0].mxu0
    %766 = vmatprep.mubr.bf16.mxu0 %v431
    %767 = vmatmul.mubr.bf16.gmra.mrb[0].mxu0 %v430
    %v768 = vpop.f32.mrb[0].mxu0
    %v769 = vadd.f32 0.0, %v768
    %v770 = vpop.f32.mrb[0].mxu0
    %v771 = vpop.f32.mrb[0].mxu0
    %v772 = vadd.f32 0.0, %v771
    %v773 = vpop.f32.mrb[0].mxu0
    %774 = vmatprep.mubr.bf16.mxu0 %v435
    %775 = vmatmul.mubr.bf16.gmra.mrb[0].mxu0 %v434
    %v776 = vpop.f32.mrb[0].mxu0
    %v777 = vadd.f32 0.0, %v776
    %v778 = vpop.f32.mrb[0].mxu0
    %v779 = vpop.f32.mrb[0].mxu0
    %v780 = vadd.f32 0.0, %v779
    %v781 = vpop.f32.mrb[0].mxu0
    %782 = vmatprep.mubr.bf16.mxu0 %v439
    %783 = vmatmul.mubr.bf16.gmra.mrb[0].mxu0 %v438
    %v784 = vpop.f32.mrb[0].mxu0
    %v785 = vadd.f32 0.0, %v784
    %v786 = vpop.f32.mrb[0].mxu0
    %v787 = vpop.f32.mrb[0].mxu0
    %v788 = vadd.f32 0.0, %v787
    %v789 = vpop.f32.mrb[0].mxu0
    %790 = vmatprep.mubr.bf16.mxu0 %v443
    %791 = vmatmul.mubr.bf16.gmra.mrb[0].mxu0 %v442
    %v792 = vpop.f32.mrb[0].mxu0
    %v793 = vadd.f32 0.0, %v792
    %v794 = vpop.f32.mrb[0].mxu0
    %v795 = vpop.f32.mrb[0].mxu0
    %v796 = vadd.f32 0.0, %v795
    %v797 = vpop.f32.mrb[0].mxu0
    %798 = vdwg.mxu0
    %799 = vmatprep.subr.bf16.mxu0 %v673
    %800 = vmatpush1.bf16.xpose.msra.mxu0 %v672
    %801 = vmatprep.subr.bf16.mxu0 %v677
    %802 = vmatpush1.bf16.xpose.msra.mxu0 %v676
    %803 = vmatprep.subr.bf16.mxu0 %v681
    %804 = vmatpush1.bf16.xpose.msra.mxu0 %v680
    %805 = vmatprep.subr.bf16.mxu0 %v685
    %806 = vmatpush1.bf16.xpose.msra.mxu0 %v684
    %807 = vmatprep.subr.bf16.mxu0 %v689
    %808 = vmatpush1.bf16.xpose.msra.mxu0 %v688
    %809 = vmatprep.subr.bf16.mxu0 %v693
    %810 = vmatpush1.bf16.xpose.msra.mxu0 %v692
    %811 = vmatprep.subr.bf16.mxu0 %v697
    %812 = vmatpush1.bf16.xpose.msra.mxu0 %v696
    %813 = vmatprep.subr.bf16.mxu0 %v701
    %814 = vmatpush1.bf16.xpose.msra.mxu0 %v700
    %815 = vmatprep.subr.bf16.mxu0 0
    %816 = vmatpush1.bf16.xpose.msra.mxu0 0
    %817 = vmatprep.subr.bf16.mxu0 0
    %818 = vmatpush1.bf16.xpose.msra.mxu0 0
    %819 = vmatprep.subr.bf16.mxu0 0
    %820 = vmatpush1.bf16.xpose.msra.mxu0 0
    %821 = vmatprep.subr.bf16.mxu0 0
    %822 = vmatpush1.bf16.xpose.msra.mxu0 0
    %823 = vmatprep.subr.bf16.mxu0 0
    %824 = vmatpush1.bf16.xpose.msra.mxu0 0
    %825 = vmatprep.subr.bf16.mxu0 0
    %826 = vmatpush1.bf16.xpose.msra.mxu0 0
    %827 = vmatprep.subr.bf16.mxu0 0
    %828 = vmatpush1.bf16.xpose.msra.mxu0 0
    %829 = vmatprep.subr.bf16.mxu0 0
    %830 = vmatpush1.bf16.xpose.msra.mxu0 0
    %831 = vmatprep.mubr.bf16.mxu0 %v417
    %832 = vmatmul.mubr.bf16.gmra.mrb[0].mxu0 %v416
    %v833 = vpop.f32.mrb[0].mxu0
    %v834 = vadd.f32 %v737, %v833
    %v835 = vpop.f32.mrb[0].mxu0
    %v836 = vpop.f32.mrb[0].mxu0
    %v837 = vadd.f32 %v740, %v836
    %v838 = vpop.f32.mrb[0].mxu0
    %839 = vmatprep.mubr.bf16.mxu0 %v421
    %840 = vmatmul.mubr.bf16.gmra.mrb[0].mxu0 %v420
    %v841 = vpop.f32.mrb[0].mxu0
    %v842 = vadd.f32 %v745, %v841
    %v843 = vpop.f32.mrb[0].mxu0
    %v844 = vpop.f32.mrb[0].mxu0
    %v845 = vadd.f32 %v748, %v844
    %v846 = vpop.f32.mrb[0].mxu0
    %847 = vmatprep.mubr.bf16.mxu0 %v425
    %848 = vmatmul.mubr.bf16.gmra.mrb[0].mxu0 %v424
    %v849 = vpop.f32.mrb[0].mxu0
    %v850 = vadd.f32 %v753, %v849
    %v851 = vpop.f32.mrb[0].mxu0
    %v852 = vpop.f32.mrb[0].mxu0
    %v853 = vadd.f32 %v756, %v852
    %v854 = vpop.f32.mrb[0].mxu0
    %855 = vmatprep.mubr.bf16.mxu0 %v429
    %856 = vmatmul.mubr.bf16.gmra.mrb[0].mxu0 %v428
    %v857 = vpop.f32.mrb[0].mxu0
    %v858 = vadd.f32 %v761, %v857
    %v859 = vpop.f32.mrb[0].mxu0
    %v860 = vpop.f32.mrb[0].mxu0
    %v861 = vadd.f32 %v764, %v860
    %v862 = vpop.f32.mrb[0].mxu0
    %863 = vmatprep.mubr.bf16.mxu0 %v433
    %864 = vmatmul.mubr.bf16.gmra.mrb[0].mxu0 %v432
    %v865 = vpop.f32.mrb[0].mxu0
    %v866 = vadd.f32 %v769, %v865
    %v867 = vpop.f32.mrb[0].mxu0
    %v868 = vpop.f32.mrb[0].mxu0
    %v869 = vadd.f32 %v772, %v868
    %v870 = vpop.f32.mrb[0].mxu0
    %871 = vmatprep.mubr.bf16.mxu0 %v437
    %872 = vmatmul.mubr.bf16.gmra.mrb[0].mxu0 %v436
    %v873 = vpop.f32.mrb[0].mxu0
    %v874 = vadd.f32 %v777, %v873
    %v875 = vpop.f32.mrb[0].mxu0
    %v876 = vpop.f32.mrb[0].mxu0
    %v877 = vadd.f32 %v780, %v876
    %v878 = vpop.f32.mrb[0].mxu0
    %879 = vmatprep.mubr.bf16.mxu0 %v441
    %880 = vmatmul.mubr.bf16.gmra.mrb[0].mxu0 %v440
    %v881 = vpop.f32.mrb[0].mxu0
    %v882 = vadd.f32 %v785, %v881
    %v883 = vpop.f32.mrb[0].mxu0
    %v884 = vpop.f32.mrb[0].mxu0
    %v885 = vadd.f32 %v788, %v884
    %v886 = vpop.f32.mrb[0].mxu0
    %887 = vmatprep.mubr.bf16.mxu0 %v445
    %888 = vmatmul.mubr.bf16.gmra.mrb[0].mxu0 %v444
    %v889 = vpop.f32.mrb[0].mxu0
    %v890 = vadd.f32 %v793, %v889
    %v891 = vpop.f32.mrb[0].mxu0
    %v892 = vpop.f32.mrb[0].mxu0
    %v893 = vadd.f32 %v796, %v892
    %v894 = vpop.f32.mrb[0].mxu0
    %895 = vdwg.mxu0
    %896 = vst [vmem:[%s3] sm:$0xff] %v834
    %897 = vst [vmem:[%s3 + $0x8] sm:$0xff] %v837
    %898 = vst [vmem:[%s3 + $0x10] sm:$0xff] %v842
    %899 = vst [vmem:[%s3 + $0x18] sm:$0xff] %v845
    %900 = vst [vmem:[%s3 + $0x20] sm:$0xff] %v850
    %901 = vst [vmem:[%s3 + $0x28] sm:$0xff] %v853
    %902 = vst [vmem:[%s3 + $0x30] sm:$0xff] %v858
    %903 = vst [vmem:[%s3 + $0x38] sm:$0xff] %v861
    %904 = vst [vmem:[%s3 + $0x40] sm:$0xff] %v866
    %905 = vst [vmem:[%s3 + $0x48] sm:$0xff] %v869
    %906 = vst [vmem:[%s3 + $0x50] sm:$0xff] %v874
    %907 = vst [vmem:[%s3 + $0x58] sm:$0xff] %v877
    %908 = vst [vmem:[%s3 + $0x60] sm:$0xff] %v882
    %909 = vst [vmem:[%s3 + $0x68] sm:$0xff] %v885
    %910 = vst [vmem:[%s3 + $0x70] sm:$0xff] %v890
    %911 = vst [vmem:[%s3 + $0x78] sm:$0xff] %v893
    // Predicated region
    $region22: #{clip_contrastive_logits.1} parent=1 // pred_check
      _
    $region23: #{clip_contrastive_logits.1} parent=1 // pred_check_branch
      %913 = sbr.rel (0) target = $region25
    $region24: #{clip_contrastive_logits.1} parent=1 // pred_region
      _
    $region25: #{clip_contrastive_logits.1} parent=1 // pred_fallthru
      _
    // Predicated region
    $region26: #{clip_contrastive_logits.1} parent=1 // pred_check
      _
    $region27: #{clip_contrastive_logits.1} parent=1 // pred_check_branch
      %915 = sbr.rel (0) target = $region29
    $region28: #{clip_contrastive_logits.1} parent=1 // pred_region
      _
    $region29: #{clip_contrastive_logits.1} parent=1 // pred_fallthru
      _
    %916 = vsyncpa [#allocation4], 1
    %917 = vsyncpa [#allocation6], 1

</llo_original>
